<compile_context>
chip_gen: v6e
topology: v6e:2x2x1
jax: 0.10.0
libtpu: 0.0.40
codegen_flags: <defaults>
</compile_context>

<pallas_src>
import jax
import jax.numpy as jnp
import numpy as np
from jax.experimental import pallas as pl
from jax.experimental.pallas import tpu as pltpu

LANE = 128  # gate column padding so every gate slice / store is lane-dense


def encoder_fused_kernel(tok_ref, t_ref, b_rzn_ref, b_hn_ref, out_ref):
    """Embedding lookup + single GRU step (PyTorch gate order r, z, n), h0 == 0.

    tok_ref  : (B, 1)      int32  token ids (precondition: 0 <= id < V)
    t_ref    : (V, 3*Hp)   f32    fused table  embedding @ [W_r | W_z | W_n],
                                  each gate padded to Hp (=128) lanes
    b_rzn_ref: (1, 3*Hp)   f32    [b_ih_r+b_hh_r | b_ih_z+b_hh_z | b_ih_n]
    b_hn_ref : (1, Hp)     f32    b_hh_n (scaled by reset gate before tanh)
    out_ref  : (B, Hp)     f32    new hidden state (padded; wrapper slices :H)
    """
    B, Hp = out_ref.shape
    V = t_ref.shape[0]

    # Embedding gather fused into the gate matmul as an exact one-hot matmul:
    # onehot @ (emb @ W) == (onehot @ emb) @ W.  Single MXU pass.
    tok = tok_ref[...]                                           # (B, 1) int32
    vocab_iota = jax.lax.broadcasted_iota(jnp.int32, (B, V), 1)  # (B, V)
    onehot = (vocab_iota == tok).astype(jnp.float32)             # (B, V)

    g = jnp.dot(onehot, t_ref[...],
                preferred_element_type=jnp.float32) + b_rzn_ref[...]  # (B, 3Hp)

    # Lane-aligned gate slices (each a whole 128-lane block).
    r = jax.nn.sigmoid(g[:, 0:Hp])
    z = jax.nn.sigmoid(g[:, Hp:2 * Hp])
    n = jnp.tanh(g[:, 2 * Hp:3 * Hp] + r * b_hn_ref[...])
    # h0 == 0  =>  h_new = (1 - z) * n + z * 0
    out_ref[...] = (1.0 - z) * n                                  # unmasked vst


class EncoderPallas:
    """JAX/Pallas port of the PyTorch `Encoder` (Embedding + 1-layer GRU)."""

    def __init__(self, dim_input, dim_hidden, dim_embed, key):
        self.dim_input = dim_input
        self.dim_hidden = dim_hidden
        self.dim_embed = dim_embed
        # Padded per-gate width (lane-aligned).
        self.hp = ((dim_hidden + LANE - 1) // LANE) * LANE

        keys = jax.random.split(key, 5)
        k = 1.0 / np.sqrt(dim_hidden)
        # nn.Embedding default init: N(0, 1)
        self.embedding = jax.random.normal(
            keys[0], (dim_input, dim_embed), dtype=jnp.float32)
        # nn.GRU default init: U(-1/sqrt(H), 1/sqrt(H)); gate order (r, z, n).
        self.w_ih = jax.random.uniform(
            keys[1], (3, dim_embed, dim_hidden), jnp.float32, minval=-k, maxval=k)
        self.w_hh = jax.random.uniform(
            keys[2], (3, dim_hidden, dim_hidden), jnp.float32, minval=-k, maxval=k)
        self.b_ih = jax.random.uniform(
            keys[3], (3, dim_hidden), jnp.float32, minval=-k, maxval=k)
        self.b_hh = jax.random.uniform(
            keys[4], (3, dim_hidden), jnp.float32, minval=-k, maxval=k)

        # --- precomputed, kernel-friendly packed forms ----------------------
        H, Hp, V = dim_hidden, self.hp, dim_input

        # Fused embedding+gate table, one gate per 128-lane column block.
        # T_g = embedding @ W_ih_g  -> (V, H), zero-padded to (V, Hp).
        t_packed = np.zeros((V, 3 * Hp), dtype=np.float32)
        b_rzn = np.zeros((1, 3 * Hp), dtype=np.float32)
        for gate in range(3):
            t_gate = np.asarray(self.embedding @ self.w_ih[gate])       # (V, H)
            t_packed[:, gate * Hp:gate * Hp + H] = t_gate
        # h0 == 0 => hidden-side pre-activation is just b_hh; fold it into the
        # bias for the r and z gates; keep b_hh_n separate (it gets r-scaled).
        b_rzn[0, 0 * Hp:0 * Hp + H] = np.asarray(self.b_ih[0] + self.b_hh[0])
        b_rzn[0, 1 * Hp:1 * Hp + H] = np.asarray(self.b_ih[1] + self.b_hh[1])
        b_rzn[0, 2 * Hp:2 * Hp + H] = np.asarray(self.b_ih[2])
        b_hn = np.zeros((1, Hp), dtype=np.float32)
        b_hn[0, :H] = np.asarray(self.b_hh[2])

        self.t_packed = jnp.asarray(t_packed)   # (V, 3*Hp)
        self.b_rzn = jnp.asarray(b_rzn)         # (1, 3*Hp)
        self.b_hn = jnp.asarray(b_hn)           # (1, Hp)

    def __call__(self, input_vector):
        B = self.dim_embed            # PyTorch .view(1, dim_embed, dim_embed)
        H = self.dim_hidden
        Hp = self.hp

        # Requires len(input_vector) == dim_embed, exactly like the .view().
        tokens = input_vector.astype(jnp.int32).reshape(B, 1)

        vmem = pl.BlockSpec(memory_space=pltpu.MemorySpace.VMEM)
        h_pad = pl.pallas_call(
            encoder_fused_kernel,
            out_shape=jax.ShapeDtypeStruct((B, Hp), jnp.float32),
            in_specs=[vmem] * 4,
            out_specs=vmem,
            compiler_params=pltpu.CompilerParams(
                vmem_limit_bytes=16 * 1024 * 1024),
        )(tokens, self.t_packed, self.b_rzn, self.b_hn)

        # Drop lane padding; seq_len == 1 => outputs == final hidden.
        h_new = h_pad[:, :H]
        out = h_new[None, :, :]
        return out, out


def _reference_forward(enc, input_vector):
    """Pure-JAX reference of the full GRU step (raw params, h0 = 0)."""
    tokens = input_vector.astype(jnp.int32)
    x = jnp.take(enc.embedding, tokens, axis=0).reshape(enc.dim_embed, enc.dim_embed)
    h = jnp.zeros((enc.dim_embed, enc.dim_hidden), jnp.float32)
    gi = [x @ enc.w_ih[g] + enc.b_ih[g] for g in range(3)]
    gh = [h @ enc.w_hh[g] + enc.b_hh[g] for g in range(3)]
    r = jax.nn.sigmoid(gi[0] + gh[0])
    z = jax.nn.sigmoid(gi[1] + gh[1])
    n = jnp.tanh(gi[2] + r * gh[2])
    h_new = (1.0 - z) * n + z * h
    return h_new[None], h_new[None]


if __name__ == "__main__":
    dim_input, dim_hidden, dim_embed = 16, 32, 32

    key = jax.random.PRNGKey(0)
    k_param, k_tok = jax.random.split(key)
    enc = EncoderPallas(dim_input, dim_hidden, dim_embed, k_param)

    # forward requires len(input_vector) == dim_embed (because of the .view)
    input_vector = jax.random.randint(k_tok, (dim_embed,), 0, dim_input)

    outputs, hidden = enc(input_vector)
    outputs, hidden = jax.block_until_ready((outputs, hidden))

    ref_out, ref_hid = _reference_forward(enc, input_vector)
    np.testing.assert_allclose(np.asarray(outputs), np.asarray(ref_out),
                               rtol=1e-5, atol=1e-5)
    np.testing.assert_allclose(np.asarray(hidden), np.asarray(ref_hid),
                               rtol=1e-5, atol=1e-5)
    assert outputs.shape == (1, dim_embed, dim_hidden)
    assert hidden.shape == (1, dim_embed, dim_hidden)

    print("KERNEL_OK")
</pallas_src>

<mosaic_0001>
module attributes {stable_mosaic.version = 11 : i64} {
  func.func @encoder_fused_kernel(%arg0: memref<32x1xi32, #tpu.memory_space<vmem>>, %arg1: memref<16x384xf32, #tpu.memory_space<vmem>>, %arg2: memref<1x384xf32, #tpu.memory_space<vmem>>, %arg3: memref<1x128xf32, #tpu.memory_space<vmem>>, %arg4: memref<32x128xf32, #tpu.memory_space<vmem>>) attributes {dimension_semantics = [], scalar_prefetch = 0 : i64, scratch_operands = 0 : i64, tpu.core_type = #tpu.core_type<tc>} {
    %c0 = arith.constant 0 : index
    %c0_0 = arith.constant 0 : index
    %0 = vector.load %arg0[%c0, %c0_0] : memref<32x1xi32, #tpu.memory_space<vmem>>, vector<32x1xi32>
    %1 = tpu.iota {dimensions = array<i32: 1>} : vector<32x16xi32>
    %2 = vector.broadcast %0 : vector<32x1xi32> to vector<32x16xi32>
    %3 = arith.cmpi eq, %1, %2 : vector<32x16xi32>
    %4 = arith.extui %3 : vector<32x16xi1> to vector<32x16xi32>
    %5 = arith.sitofp %4 : vector<32x16xi32> to vector<32x16xf32>
    %c0_1 = arith.constant 0 : index
    %c0_2 = arith.constant 0 : index
    %6 = vector.load %arg1[%c0_1, %c0_2] : memref<16x384xf32, #tpu.memory_space<vmem>>, vector<16x384xf32>
    %cst = arith.constant dense<0.000000e+00> : vector<32x384xf32>
    %7 = tpu.matmul %5, %6, %cst {dimension_numbers = #tpu.dot_dimension_numbers<[1], [0], [0], [1], [0, 0, 1, 1], [], []>} : vector<32x16xf32>, vector<16x384xf32>, vector<32x384xf32> -> vector<32x384xf32>
    %c0_3 = arith.constant 0 : index
    %c0_4 = arith.constant 0 : index
    %8 = vector.load %arg2[%c0_3, %c0_4] : memref<1x384xf32, #tpu.memory_space<vmem>>, vector<1x384xf32>
    %9 = vector.broadcast %8 : vector<1x384xf32> to vector<32x384xf32>
    %10 = arith.addf %7, %9 : vector<32x384xf32>
    %11 = vector.extract_strided_slice %10 {offsets = [0, 0], sizes = [32, 128], strides = [1, 1]} : vector<32x384xf32> to vector<32x128xf32>
    %12 = arith.negf %11 : vector<32x128xf32>
    %13 = math.exp %12 : vector<32x128xf32>
    %cst_5 = arith.constant 1.000000e+00 : f32
    %14 = vector.broadcast %cst_5 : f32 to vector<32x128xf32>
    %15 = arith.addf %14, %13 : vector<32x128xf32>
    %16 = arith.divf %14, %15 : vector<32x128xf32>
    %17 = vector.extract_strided_slice %10 {offsets = [0, 128], sizes = [32, 128], strides = [1, 1]} : vector<32x384xf32> to vector<32x128xf32>
    %18 = arith.negf %17 : vector<32x128xf32>
    %19 = math.exp %18 : vector<32x128xf32>
    %cst_6 = arith.constant 1.000000e+00 : f32
    %20 = vector.broadcast %cst_6 : f32 to vector<32x128xf32>
    %21 = arith.addf %20, %19 : vector<32x128xf32>
    %22 = arith.divf %20, %21 : vector<32x128xf32>
    %23 = vector.extract_strided_slice %10 {offsets = [0, 256], sizes = [32, 128], strides = [1, 1]} : vector<32x384xf32> to vector<32x128xf32>
    %c0_7 = arith.constant 0 : index
    %c0_8 = arith.constant 0 : index
    %24 = vector.load %arg3[%c0_7, %c0_8] : memref<1x128xf32, #tpu.memory_space<vmem>>, vector<1x128xf32>
    %25 = vector.broadcast %24 : vector<1x128xf32> to vector<32x128xf32>
    %26 = arith.mulf %16, %25 : vector<32x128xf32>
    %27 = arith.addf %23, %26 : vector<32x128xf32>
    %28 = math.tanh %27 : vector<32x128xf32>
    %cst_9 = arith.constant 1.000000e+00 : f32
    %29 = vector.broadcast %cst_9 : f32 to vector<32x128xf32>
    %30 = arith.subf %29, %22 : vector<32x128xf32>
    %31 = arith.mulf %30, %28 : vector<32x128xf32>
    %c0_10 = arith.constant 0 : index
    %c0_11 = arith.constant 0 : index
    %32 = vector.load %arg4[%c0_10, %c0_11] : memref<32x128xf32, #tpu.memory_space<vmem>>, vector<32x128xf32>
    tpu.vector_store %arg4[%c0_10, %c0_11], %31 {strides = array<i32>} : memref<32x128xf32, #tpu.memory_space<vmem>>, vector<32x128xf32>,
    return
  }
}

</mosaic_0001>

<llo_original>
// kernel: tpu_custom_call.1
$region0: #{tpu_custom_call.1}
  #allocation0 [shape = 'u32[]', space=smem, size = 0x4, offset = 0x4, fixed_abs, tag = 'smem constant byte address 0x4 - core index']
  #allocation1 [shape = 'u32[144,128]{1,0:T(1,128)}', space=vmem, size = 0x12000, scoped, tag = 'internal scratch']
  %s0 = inlined_call_operand.vmem [shape: s32[32,1], index: 0, kind: input, shape index: {}]
  %s1 = inlined_call_operand.hbm [shape: f32[16,384], index: 1, kind: input, shape index: {}]
  %s2 = inlined_call_operand.vmem [shape: f32[1,384], index: 2, kind: input, shape index: {}]
  %s3 = inlined_call_operand.vmem [shape: f32[1,128], index: 3, kind: input, shape index: {}]
  %s4 = inlined_call_operand.hbm [shape: f32[32,128], index: 4, kind: output, shape index: {}]
  %s5 = sld [smem:[#allocation0]]
  $region30: #{tpu_custom_call.1} parent=0
    _
  %s7 = ssub.s32 1, %s5
  %s8 = scalar_select 0, %s7, %s5
  $region1: #{tpu_custom_call.1} parent=0
    #allocation2 [shape = 'u8[24576]{0}', space=vmem, size = 0x6000, scoped, tag = 'input window, operand 1, single buffered']
    #allocation3 [shape = 's32[1]{0}', space=sflag, size = 0x4, scoped, tag = 'scoped memory for tpu_custom_call.1']
    #allocation4 [shape = 's32[1]{0}', space=sflag, size = 0x4, scoped, tag = 'scoped memory for tpu_custom_call.1']
    #allocation5 [shape = 'u8[16384]{0}', space=vmem, size = 0x4000, scoped, tag = 'output window, operand 0, single buffered']
    %9 = vsyncpa [#allocation3], 0
    %10 = vsyncpa [#allocation4], 0
    // Predicated region
    $region2: #{tpu_custom_call.1} parent=1 // pred_check
      _
    $region3: #{tpu_custom_call.1} parent=1 // pred_check_branch
      %12 = sbr.rel (0) target = $region5
    $region4: #{tpu_custom_call.1} parent=1 // pred_region
      _
    $region5: #{tpu_custom_call.1} parent=1 // pred_fallthru
      _
    // Predicated region
    $region6: #{tpu_custom_call.1} parent=1 // pred_check
      _
    $region7: #{tpu_custom_call.1} parent=1 // pred_check_branch
      %14 = sbr.rel (0) target = $region9
    $region8: #{tpu_custom_call.1} parent=1 // pred_region
      %s16 = ssub.s32 768, 768
      %17 = vsyncadd [#allocation3], %s16
      %s18 = sshll.u32 [#allocation2], 4
      %s19 = int_to_ptr.vmem [resolvable:$true] %s18
      %24 = dma.hbm_to_vmem [thread:$0]  %s1, 768, %s19, [#allocation3], 384, 384, 24
    $region9: #{tpu_custom_call.1} parent=1 // pred_fallthru
      _
    // Predicated region
    $region10: #{tpu_custom_call.1} parent=1 // pred_check
      _
    $region11: #{tpu_custom_call.1} parent=1 // pred_check_branch
      %26 = sbr.rel (0) target = $region13
    $region12: #{tpu_custom_call.1} parent=1 // pred_region
      _
    $region13: #{tpu_custom_call.1} parent=1 // pred_fallthru
      _
    // Predicated region
    $region14: #{tpu_custom_call.1} parent=1 // pred_check
      _
    $region15: #{tpu_custom_call.1} parent=1 // pred_check_branch
      %28 = sbr.rel (0) target = $region17
    $region16: #{tpu_custom_call.1} parent=1 // pred_region
      _
    $region17: #{tpu_custom_call.1} parent=1 // pred_fallthru
      _
    // Predicated region
    $region18: #{tpu_custom_call.1} parent=1 // pred_check
      _
    $region19: #{tpu_custom_call.1} parent=1 // pred_check_branch
      %30 = sbr.rel (0) target = $region21
    $region20: #{tpu_custom_call.1} parent=1 // pred_region
      %31 = dma.done [#allocation3], 768
    $region21: #{tpu_custom_call.1} parent=1 // pred_fallthru
      _
    %v32 = vld [vmem:[%s0] sm:$0xff]
    %v33 = vld [vmem:[%s0 + $0x8] sm:$0xff]
    %v34 = vld [vmem:[%s0 + $0x10] sm:$0xff]
    %v35 = vld [vmem:[%s0 + $0x18] sm:$0xff]
    %v36 = vlaneseq
    %v37 = vand.u32 %v36, 127
    %38 = vset.pattern.permute.xlu0 0
    %39 = vperm.xlu0 %38, %v32
    %v40 = vpop.permute.xlu0 %39
    %41 = vset.pattern.permute.xlu0 0
    %42 = vperm.xlu0 %41, %v33
    %v43 = vpop.permute.xlu0 %42
    %44 = vset.pattern.permute.xlu0 0
    %45 = vperm.xlu0 %44, %v34
    %v46 = vpop.permute.xlu0 %45
    %47 = vset.pattern.permute.xlu0 0
    %48 = vperm.xlu0 %47, %v35
    %v49 = vpop.permute.xlu0 %48
    %vm50 = vcmp.eq.s32.totalorder %v37, %v40
    %vm51 = vcmp.eq.s32.totalorder %v37, %v43
    %vm52 = vcmp.eq.s32.totalorder %v37, %v46
    %vm53 = vcmp.eq.s32.totalorder %v37, %v49
    %v54 = vsel %vm50, 1, 0
    %v55 = vsel %vm51, 1, 0
    %v56 = vsel %vm52, 1, 0
    %v57 = vsel %vm53, 1, 0
    %v58 = vcvt.s32.f32 %v54
    %v59 = vcvt.s32.f32 %v55
    %v60 = vcvt.s32.f32 %v56
    %v61 = vcvt.s32.f32 %v57
    %v62 = vld [vmem:[#allocation2] sm:$0xff]
    %v63 = vld [vmem:[#allocation2 + $0x8] sm:$0xff]
    %v64 = vld [vmem:[#allocation2 + $0x10] sm:$0xff]
    %v65 = vld [vmem:[#allocation2 + $0x18] sm:$0xff]
    %v66 = vld [vmem:[#allocation2 + $0x20] sm:$0xff]
    %v67 = vld [vmem:[#allocation2 + $0x28] sm:$0xff]
    %v68 = vld [vmem:[%s2] sm:$0x7]
    %v70 = vlaneseq
    %v71 = vshrl.u32 %v70, 7
    %v72 = vsub.s32 0, %v71
    %v73 = vrot.slane %v68, %v72
    %v74 = vlaneseq
    %v75 = vshrl.u32 %v74, 7
    %v76 = vsub.s32 1, %v75
    %v77 = vrot.slane %v68, %v76
    %v78 = vlaneseq
    %v79 = vshrl.u32 %v78, 7
    %v80 = vsub.s32 2, %v79
    %v81 = vrot.slane %v68, %v80
    %vm85 = vcmask 130048
    %v87 = vsel %vm85, %v58, 0
    %v90 = vsel %vm85, %v59, 0
    %v93 = vsel %vm85, %v60, 0
    %v96 = vsel %vm85, %v61, 0
    %98 = vmatprep.subr.mxu0 0.0
    %99 = vmatpush1.msra.mxu0 0.0
    %100 = vmatprep.subr.mxu0 0.0
    %101 = vmatpush1.msra.mxu0 0.0
    %102 = vmatprep.subr.mxu0 0.0
    %103 = vmatpush1.msra.mxu0 0.0
    %104 = vmatprep.subr.mxu0 0.0
    %105 = vmatpush1.msra.mxu0 0.0
    %106 = vmatprep.subr.mxu0 0.0
    %107 = vmatpush1.msra.mxu0 0.0
    %108 = vmatprep.subr.mxu0 0.0
    %109 = vmatpush1.msra.mxu0 0.0
    %110 = vmatprep.subr.mxu0 0.0
    %111 = vmatpush1.msra.mxu0 0.0
    %112 = vmatprep.subr.mxu0 0.0
    %113 = vmatpush1.msra.mxu0 0.0
    %114 = vmatprep.subr.mxu0 0.0
    %115 = vmatpush1.msra.mxu0 0.0
    %116 = vmatprep.subr.mxu0 0.0
    %117 = vmatpush1.msra.mxu0 0.0
    %118 = vmatprep.subr.mxu0 0.0
    %119 = vmatpush1.msra.mxu0 0.0
    %120 = vmatprep.subr.mxu0 0.0
    %121 = vmatpush1.msra.mxu0 0.0
    %122 = vmatprep.subr.mxu0 0.0
    %123 = vmatpush1.msra.mxu0 0.0
    %124 = vmatprep.subr.mxu0 0.0
    %125 = vmatpush1.msra.mxu0 0.0
    %126 = vmatprep.subr.mxu0 %v66
    %127 = vmatpush1.msra.mxu0 %v65
    %128 = vmatprep.subr.mxu0 %v63
    %129 = vmatpush1.msra.mxu0 %v62
    %130 = vmatprep.subr.mxu0 0.0
    %131 = vmatpush2.msra.mxu0 0.0
    %132 = vmatprep.subr.mxu0 0.0
    %133 = vmatpush2.msra.mxu0 0.0
    %134 = vmatprep.subr.mxu0 0.0
    %135 = vmatpush2.msra.mxu0 0.0
    %136 = vmatprep.subr.mxu0 0.0
    %137 = vmatpush2.msra.mxu0 0.0
    %138 = vmatprep.subr.mxu0 0.0
    %139 = vmatpush2.msra.mxu0 0.0
    %140 = vmatprep.subr.mxu0 0.0
    %141 = vmatpush2.msra.mxu0 0.0
    %142 = vmatprep.subr.mxu0 0.0
    %143 = vmatpush2.msra.mxu0 0.0
    %144 = vmatprep.subr.mxu0 0.0
    %145 = vmatpush2.msra.mxu0 0.0
    %146 = vmatprep.subr.mxu0 0.0
    %147 = vmatpush2.msra.mxu0 0.0
    %148 = vmatprep.subr.mxu0 0.0
    %149 = vmatpush2.msra.mxu0 0.0
    %150 = vmatprep.subr.mxu0 0.0
    %151 = vmatpush2.msra.mxu0 0.0
    %152 = vmatprep.subr.mxu0 0.0
    %153 = vmatpush2.msra.mxu0 0.0
    %154 = vmatprep.subr.mxu0 0.0
    %155 = vmatpush2.msra.mxu0 0.0
    %156 = vmatprep.subr.mxu0 0.0
    %157 = vmatpush2.msra.mxu0 0.0
    %158 = vmatprep.subr.mxu0 0.0
    %159 = vmatpush2.msra.mxu0 0.0
    %160 = vmatprep.subr.mxu0 0.0
    %161 = vmatpush2.msra.mxu0 0.0
    %162 = vmatprep.mubr.f32.mxu0 0.0
    %163 = vmatmul.mubr.f32.gmra.mxu0 %v87
    %v164 = vpop.f32.mrf.mxu0
    %v165 = vadd.f32 %v73, %v164
    %v166 = vpop.f32.mrf.mxu0
    %v167 = vadd.f32 %v77, %v166
    %168 = vmatprep.mubr.f32.mxu0 0.0
    %169 = vmatmul.mubr.f32.gmra.mxu0 %v90
    %v170 = vpop.f32.mrf.mxu0
    %v171 = vadd.f32 %v73, %v170
    %v172 = vpop.f32.mrf.mxu0
    %v173 = vadd.f32 %v77, %v172
    %174 = vmatprep.mubr.f32.mxu0 0.0
    %175 = vmatmul.mubr.f32.gmra.mxu0 %v93
    %v176 = vpop.f32.mrf.mxu0
    %v177 = vadd.f32 %v73, %v176
    %v178 = vpop.f32.mrf.mxu0
    %v179 = vadd.f32 %v77, %v178
    %180 = vmatprep.mubr.f32.mxu0 0.0
    %181 = vmatmul.mubr.f32.gmra.mxu0 %v96
    %v182 = vpop.f32.mrf.mxu0
    %v183 = vadd.f32 %v73, %v182
    %v184 = vpop.f32.mrf.mxu0
    %v185 = vadd.f32 %v77, %v184
    %186 = vdwg.mxu0
    %187 = vmatprep.subr.mxu0 0.0
    %188 = vmatpush1.msra.mxu0 0.0
    %189 = vmatprep.subr.mxu0 0.0
    %190 = vmatpush1.msra.mxu0 0.0
    %191 = vmatprep.subr.mxu0 0.0
    %192 = vmatpush1.msra.mxu0 0.0
    %193 = vmatprep.subr.mxu0 0.0
    %194 = vmatpush1.msra.mxu0 0.0
    %195 = vmatprep.subr.mxu0 0.0
    %196 = vmatpush1.msra.mxu0 0.0
    %197 = vmatprep.subr.mxu0 0.0
    %198 = vmatpush1.msra.mxu0 0.0
    %199 = vmatprep.subr.mxu0 0.0
    %200 = vmatpush1.msra.mxu0 0.0
    %201 = vmatprep.subr.mxu0 0.0
    %202 = vmatpush1.msra.mxu0 0.0
    %203 = vmatprep.subr.mxu0 0.0
    %204 = vmatpush1.msra.mxu0 0.0
    %205 = vmatprep.subr.mxu0 0.0
    %206 = vmatpush1.msra.mxu0 0.0
    %207 = vmatprep.subr.mxu0 0.0
    %208 = vmatpush1.msra.mxu0 0.0
    %209 = vmatprep.subr.mxu0 0.0
    %210 = vmatpush1.msra.mxu0 0.0
    %211 = vmatprep.subr.mxu0 0.0
    %212 = vmatpush1.msra.mxu0 0.0
    %213 = vmatprep.subr.mxu0 0.0
    %214 = vmatpush1.msra.mxu0 0.0
    %215 = vmatprep.subr.mxu0 0.0
    %216 = vmatpush1.msra.mxu0 %v67
    %217 = vmatprep.subr.mxu0 0.0
    %218 = vmatpush1.msra.mxu0 %v64
    %219 = vmatprep.subr.mxu0 0.0
    %220 = vmatpush2.msra.mxu0 0.0
    %221 = vmatprep.subr.mxu0 0.0
    %222 = vmatpush2.msra.mxu0 0.0
    %223 = vmatprep.subr.mxu0 0.0
    %224 = vmatpush2.msra.mxu0 0.0
    %225 = vmatprep.subr.mxu0 0.0
    %226 = vmatpush2.msra.mxu0 0.0
    %227 = vmatprep.subr.mxu0 0.0
    %228 = vmatpush2.msra.mxu0 0.0
    %229 = vmatprep.subr.mxu0 0.0
    %230 = vmatpush2.msra.mxu0 0.0
    %231 = vmatprep.subr.mxu0 0.0
    %232 = vmatpush2.msra.mxu0 0.0
    %233 = vmatprep.subr.mxu0 0.0
    %234 = vmatpush2.msra.mxu0 0.0
    %235 = vmatprep.subr.mxu0 0.0
    %236 = vmatpush2.msra.mxu0 0.0
    %237 = vmatprep.subr.mxu0 0.0
    %238 = vmatpush2.msra.mxu0 0.0
    %239 = vmatprep.subr.mxu0 0.0
    %240 = vmatpush2.msra.mxu0 0.0
    %241 = vmatprep.subr.mxu0 0.0
    %242 = vmatpush2.msra.mxu0 0.0
    %243 = vmatprep.subr.mxu0 0.0
    %244 = vmatpush2.msra.mxu0 0.0
    %245 = vmatprep.subr.mxu0 0.0
    %246 = vmatpush2.msra.mxu0 0.0
    %247 = vmatprep.subr.mxu0 0.0
    %248 = vmatpush2.msra.mxu0 0.0
    %249 = vmatprep.subr.mxu0 0.0
    %250 = vmatpush2.msra.mxu0 0.0
    %251 = vmatprep.mubr.f32.mxu0 0.0
    %252 = vmatmul.mubr.f32.gmra.mxu0 %v87
    %v253 = vpop.f32.mrf.mxu0
    %v254 = vadd.f32 %v81, %v253
    %v255 = vpop.f32.mrf.mxu0
    %256 = vmatprep.mubr.f32.mxu0 0.0
    %257 = vmatmul.mubr.f32.gmra.mxu0 %v90
    %v258 = vpop.f32.mrf.mxu0
    %v259 = vadd.f32 %v81, %v258
    %v260 = vpop.f32.mrf.mxu0
    %261 = vmatprep.mubr.f32.mxu0 0.0
    %262 = vmatmul.mubr.f32.gmra.mxu0 %v93
    %v263 = vpop.f32.mrf.mxu0
    %v264 = vadd.f32 %v81, %v263
    %v265 = vpop.f32.mrf.mxu0
    %266 = vmatprep.mubr.f32.mxu0 0.0
    %267 = vmatmul.mubr.f32.gmra.mxu0 %v96
    %v268 = vpop.f32.mrf.mxu0
    %v269 = vadd.f32 %v81, %v268
    %v270 = vpop.f32.mrf.mxu0
    %271 = vdwg.mxu0
    %v272 = vxor.u32 %v165, 2147483648
    %v273 = vxor.u32 %v171, 2147483648
    %v274 = vxor.u32 %v177, 2147483648
    %v275 = vxor.u32 %v183, 2147483648
    %v276 = vmul.f32 %v272, 1.442695
    %v277 = vpow.pop %v276
    %v278 = vmul.f32 %v273, 1.442695
    %v279 = vpow.pop %v278
    %v280 = vmul.f32 %v274, 1.442695
    %v281 = vpow.pop %v280
    %v282 = vmul.f32 %v275, 1.442695
    %v283 = vpow.pop %v282
    %v284 = vadd.f32 %v277, 1.0
    %v285 = vadd.f32 %v279, 1.0
    %v286 = vadd.f32 %v281, 1.0
    %v287 = vadd.f32 %v283, 1.0
    %v288 = vrcp.pop %v284
    %v289 = vmul.f32 1.0, %v288
    %v290 = vrcp.pop %v285
    %v291 = vmul.f32 1.0, %v290
    %v292 = vrcp.pop %v286
    %v293 = vmul.f32 1.0, %v292
    %v294 = vrcp.pop %v287
    %v295 = vmul.f32 1.0, %v294
    %v296 = vxor.u32 %v167, 2147483648
    %v297 = vxor.u32 %v173, 2147483648
    %v298 = vxor.u32 %v179, 2147483648
    %v299 = vxor.u32 %v185, 2147483648
    %v300 = vmul.f32 %v296, 1.442695
    %v301 = vpow.pop %v300
    %v302 = vmul.f32 %v297, 1.442695
    %v303 = vpow.pop %v302
    %v304 = vmul.f32 %v298, 1.442695
    %v305 = vpow.pop %v304
    %v306 = vmul.f32 %v299, 1.442695
    %v307 = vpow.pop %v306
    %v308 = vadd.f32 %v301, 1.0
    %v309 = vadd.f32 %v303, 1.0
    %v310 = vadd.f32 %v305, 1.0
    %v311 = vadd.f32 %v307, 1.0
    %v312 = vrcp.pop %v308
    %v313 = vmul.f32 1.0, %v312
    %v314 = vrcp.pop %v309
    %v315 = vmul.f32 1.0, %v314
    %v316 = vrcp.pop %v310
    %v317 = vmul.f32 1.0, %v316
    %v318 = vrcp.pop %v311
    %v319 = vmul.f32 1.0, %v318
    %v320 = vld [vmem:[%s3] sm:$0x1]
    %v322 = vlaneseq
    %v323 = vshrl.u32 %v322, 7
    %v324 = vsub.s32 0, %v323
    %v325 = vrot.slane %v320, %v324
    %v327 = vmul.f32 %v289, %v325
    %v328 = vmul.f32 %v291, %v325
    %v329 = vmul.f32 %v293, %v325
    %v330 = vmul.f32 %v295, %v325
    %v331 = vadd.f32 %v254, %v327
    %v332 = vadd.f32 %v259, %v328
    %v333 = vadd.f32 %v264, %v329
    %v334 = vadd.f32 %v269, %v330
    %v335 = vtanh.pop %v331
    %v336 = vtanh.pop %v332
    %v337 = vtanh.pop %v333
    %v338 = vtanh.pop %v334
    %v339 = vsub.f32 1.0, %v313
    %v340 = vsub.f32 1.0, %v315
    %v341 = vsub.f32 1.0, %v317
    %v342 = vsub.f32 1.0, %v319
    %v343 = vmul.f32 %v339, %v335
    %v344 = vmul.f32 %v340, %v336
    %v345 = vmul.f32 %v341, %v337
    %v346 = vmul.f32 %v342, %v338
    %347 = vst [vmem:[#allocation5] sm:$0xff] %v343
    %348 = vst [vmem:[#allocation5 + $0x8] sm:$0xff] %v344
    %349 = vst [vmem:[#allocation5 + $0x10] sm:$0xff] %v345
    %350 = vst [vmem:[#allocation5 + $0x18] sm:$0xff] %v346
    // Predicated region
    $region22: #{tpu_custom_call.1} parent=1 // pred_check
      _
    $region23: #{tpu_custom_call.1} parent=1 // pred_check_branch
      %352 = sbr.rel (0) target = $region25
    $region24: #{tpu_custom_call.1} parent=1 // pred_region
      %s354 = ssub.s32 512, 512
      %355 = vsyncadd [#allocation4], %s354
      %s356 = sshll.u32 [#allocation5], 4
      %s357 = int_to_ptr.vmem [resolvable:$true] %s356
      %362 = dma.vmem_to_hbm [thread:$0]  %s357, 512, %s4, [#allocation4], 128, 128, 8
    $region25: #{tpu_custom_call.1} parent=1 // pred_fallthru
      _
    // Predicated region
    $region26: #{tpu_custom_call.1} parent=1 // pred_check
      _
    $region27: #{tpu_custom_call.1} parent=1 // pred_check_branch
      %364 = sbr.rel (0) target = $region29
    $region28: #{tpu_custom_call.1} parent=1 // pred_region
      %365 = dma.done [#allocation4], 512
    $region29: #{tpu_custom_call.1} parent=1 // pred_fallthru
      _
    %366 = vsyncpa [#allocation3], 1
    %367 = vsyncpa [#allocation4], 1

</llo_original>
